<compile_context>
chip_gen: v7x
topology: tpu7x:2x2x1
jax: 0.10.0
libtpu: 0.0.40
codegen_flags: <defaults>
</compile_context>

<pallas_src>
import jax
import jax.numpy as jnp
from jax.experimental import pallas as pl
from jax.experimental.pallas import tpu as pltpu

_NEG_BIG = -1e30  # finite "-inf" for masked (padded) vocab columns; exp underflows to 0


def _round_up(x, m):
    return ((x + m - 1) // m) * m


def _make_kernel(vocab, tile_v, grid_v, cache_logits):
    """Build the two-pass Linear + LogSoftmax kernel, specialized at trace time."""
    ragged = (vocab % tile_v) != 0

    def kernel(x_ref, w_ref, b_ref, o_ref, m_sc, l_sc, lse_sc, *rest):
        logits_sc = rest[0] if cache_logits else None
        p = pl.program_id(1)   # phase: 0 = stats sweep, 1 = write sweep
        j = pl.program_id(2)   # vocab tile index (innermost / fastest)

        def compute_logits():
            lg = jnp.dot(x_ref[...], w_ref[...], preferred_element_type=jnp.float32)
            return lg + b_ref[...].astype(jnp.float32)

        @pl.when(p == 0)
        def _stats_pass():
            logits = compute_logits()
            if ragged:
                # Mask columns beyond the true vocab (boundary-block DMA padding is
                # undefined data); where() also stops any NaN garbage from leaking.
                col = jax.lax.broadcasted_iota(jnp.int32, logits.shape, 1) + j * tile_v
                logits = jnp.where(col < vocab, logits, _NEG_BIG)
            if cache_logits:
                start = pl.multiple_of(j * tile_v, tile_v)
                logits_sc[:, pl.ds(start, tile_v)] = logits

            @pl.when(j == 0)
            def _init():
                m_sc[...] = jnp.full_like(m_sc, -jnp.inf)
                l_sc[...] = jnp.zeros_like(l_sc)

            m_prev = m_sc[...]
            m_new = jnp.maximum(m_prev, jnp.max(logits, axis=-1, keepdims=True))
            # exp -> EUP slot, lane max/sum -> XLU slot: off the MXU/VALU critical path.
            l_sc[...] = l_sc[...] * jnp.exp(m_prev - m_new) + jnp.sum(
                jnp.exp(logits - m_new), axis=-1, keepdims=True)
            m_sc[...] = m_new

            @pl.when(j == grid_v - 1)
            def _finalize():
                lse_sc[...] = m_sc[...] + jnp.log(l_sc[...])

        @pl.when(p == 1)
        def _write_pass():
            if cache_logits:
                start = pl.multiple_of(j * tile_v, tile_v)
                logits = logits_sc[:, pl.ds(start, tile_v)]
            else:
                logits = compute_logits()
            # Padded rows/columns (if any) get garbage here; their writeback is clipped.
            o_ref[...] = (logits - lse_sc[...]).astype(o_ref.dtype)

    return kernel


def _choose_config(M, hidden, vocab, xb, wb, ob, tile_rows, tile_cols):
    """Pick (tile_m, tile_v, cache_logits, vmem_limit) from the per-chip VMEM budget."""
    try:
        capacity = int(pltpu.get_tpu_info().vmem_capacity_bytes)
    except Exception:
        capacity = 64 << 20  # conservative fallback = v7x per-TensorCore VMEM
    headroom = (16 << 20) if capacity >= (96 << 20) else (8 << 20)
    budget = capacity - headroom

    auto_rows = tile_rows is None
    rows = 512 if auto_rows else tile_rows
    cols = 512 if tile_cols is None else tile_cols

    tile_m = max(8, min(_round_up(rows, 8), _round_up(M, 8)))
    tile_v = max(128, min(_round_up(cols, 128), _round_up(vocab, 128)))

    def footprint(tm, tv, cache):
        v_strip = _round_up(vocab, tv)
        base = (2 * tm * hidden * xb      # x tile (double-buffered)
                + 2 * hidden * tv * wb    # W tile (double-buffered)
                + 2 * tv * 4              # bias tile
                + 2 * tm * tv * ob        # output tile
                + 3 * tm * 128 * 4)       # m / l / lse scratch (lane-padded)
        return base + (tm * v_strip * 4 if cache else 0)

    if auto_rows:
        # Grow the row tile toward 1024: W HBM traffic ~ 1/tile_m (dominant stream).
        while (tile_m < 1024 and tile_m * 2 <= _round_up(M, 8)
               and footprint(tile_m * 2, tile_v, False) <= budget):
            tile_m *= 2

    cache = footprint(tile_m, tile_v, True) <= budget
    while footprint(tile_m, tile_v, cache) > budget:
        if cache:
            cache = False            # fall back to the recompute path first
        elif tile_v > 256:
            tile_v //= 2             # keep >= 256 (MXU 256-wide N, lane-dense stores)
        elif tile_m > 256:
            tile_m //= 2
        else:
            break

    need = footprint(tile_m, tile_v, cache)
    vmem_limit = min(budget, max(need + need // 4 + (1 << 20), 32 << 20))
    return tile_m, tile_v, cache, vmem_limit


def masked_chem(x, w, b, *, tile_rows=None, tile_cols=None, cache_logits=None):
    """LogSoftmax(x @ W + b, axis=-1).

    x: (batch, seq, hidden); w: (hidden, vocab) [= torch Linear weight transposed];
    b: (vocab,). Returns (batch, seq, vocab) log-probabilities in x.dtype.
    Pass bf16 x/w/b to halve HBM traffic (softmax stats stay f32).
    """
    batch, seq, hidden = x.shape
    assert w.shape[0] == hidden and b.shape == (w.shape[1],)
    vocab = w.shape[1]
    M = batch * seq

    xb = jnp.dtype(x.dtype).itemsize
    wb = jnp.dtype(w.dtype).itemsize
    ob = xb

    tile_m, tile_v, auto_cache, vmem_limit = _choose_config(
        M, hidden, vocab, xb, wb, ob, tile_rows, tile_cols)
    if cache_logits is None:
        cache_logits = auto_cache

    grid_m = pl.cdiv(M, tile_m)
    grid_v = pl.cdiv(vocab, tile_v)
    v_strip = grid_v * tile_v

    x2d = x.reshape(M, hidden)
    # Only the (tiny) bias is padded; W / output boundary tiles are handled in-kernel.
    b2d = b.reshape(1, vocab).astype(jnp.float32)
    if v_strip != vocab:
        b2d = jnp.pad(b2d, ((0, 0), (0, v_strip - vocab)))

    if cache_logits:
        # Park W/bias on their last block during the write phase -> no re-fetch.
        wb_map = lambda i, p, j: (0, j * (1 - p) + (grid_v - 1) * p)
    else:
        wb_map = lambda i, p, j: (0, j)

    in_specs = [
        # x row tile: constant across (phase, vocab) -> DMA'd once per row tile.
        pl.BlockSpec((tile_m, hidden), lambda i, p, j: (i, 0)),
        # W vocab tile: streamed along the vocab axis (double-buffered).
        pl.BlockSpec((hidden, tile_v), wb_map),
        # bias vocab tile (tiny).
        pl.BlockSpec((1, tile_v), wb_map),
    ]

    scratch = [
        pltpu.VMEM((tile_m, 1), jnp.float32),   # running max
        pltpu.VMEM((tile_m, 1), jnp.float32),   # running sum-exp
        pltpu.VMEM((tile_m, 1), jnp.float32),   # final logsumexp
    ]
    if cache_logits:
        scratch.append(pltpu.VMEM((tile_m, v_strip), jnp.float32))  # logits strip

    sweeps = 1 if cache_logits else 2
    flops = 2 * sweeps * grid_m * tile_m * hidden * v_strip
    transcendentals = grid_m * tile_m * v_strip + M
    bytes_accessed = int(grid_m * tile_m * hidden * xb           # x (once per row tile)
                         + sweeps * grid_m * hidden * v_strip * wb   # W stream(s)
                         + M * vocab * ob                        # output writeback
                         + 2 * v_strip * 4)                      # bias

    out2d = pl.pallas_call(
        _make_kernel(vocab, tile_v, grid_v, cache_logits),
        out_shape=jax.ShapeDtypeStruct((M, vocab), x.dtype),
        grid_spec=pltpu.PrefetchScalarGridSpec(
            num_scalar_prefetch=0,
            grid=(grid_m, 2, grid_v),
            in_specs=in_specs,
            # Phase 0 parks the (unwritten) output buffer on block (i, 0); phase 1 walks
            # (i, 0)..(i, grid_v-1). Each block is fully written exactly once before it
            # is flushed -> lane-dense stores; boundary blocks are clipped on writeback.
            out_specs=pl.BlockSpec((tile_m, tile_v), lambda i, p, j: (i, j * p)),
            scratch_shapes=scratch,
        ),
        compiler_params=pltpu.CompilerParams(
            dimension_semantics=("parallel", "arbitrary", "arbitrary"),
            vmem_limit_bytes=vmem_limit,
        ),
        cost_estimate=pl.CostEstimate(
            flops=flops,
            transcendentals=transcendentals,
            bytes_accessed=bytes_accessed,
        ),
    )(x2d, w, b2d)

    return out2d.reshape(batch, seq, vocab)


def _reference(x, w, b):
    logits = jnp.einsum("bsh,hv->bsv", x, w) + b
    return jax.nn.log_softmax(logits, axis=-1)


if __name__ == "__main__":
    # Small shapes consistent with the module's forward: (batch, seq, hidden) -> (batch, seq, vocab).
    # Deliberately non-aligned (M=14, vocab=200) to exercise the ragged-tile masking paths.
    batch, seq, hidden, vocab = 2, 7, 32, 200

    key = jax.random.PRNGKey(0)
    kx, kw, kb = jax.random.split(key, 3)

    x = jax.random.normal(kx, (batch, seq, hidden), dtype=jnp.float32)
    bound = 1.0 / (hidden ** 0.5)
    w = jax.random.uniform(kw, (hidden, vocab), minval=-bound, maxval=bound, dtype=jnp.float32)
    b = jax.random.uniform(kb, (vocab,), minval=-bound, maxval=bound, dtype=jnp.float32)

    ref = _reference(x, w, b)

    # 1) Auto config: cached-logits path (single matmul sweep), ragged vocab tile masked.
    out = jax.block_until_ready(masked_chem(x, w, b))
    assert out.shape == (batch, seq, vocab)
    assert jnp.allclose(out, ref, atol=1e-5, rtol=1e-5), "mismatch (auto / cached logits)"

    # 2) Forced small tiles + recompute path: multiple row tiles AND vocab tiles.
    out2 = jax.block_until_ready(
        masked_chem(x, w, b, tile_rows=8, tile_cols=128, cache_logits=False))
    assert jnp.allclose(out2, ref, atol=1e-5, rtol=1e-5), "mismatch (tiled / recompute)"

    # 3) bf16 inputs/weights/output (halves the dominant W HBM stream; stats stay f32).
    x_bf, w_bf, b_bf = (x.astype(jnp.bfloat16), w.astype(jnp.bfloat16),
                        b.astype(jnp.bfloat16))
    ref_bf = _reference(x_bf.astype(jnp.float32), w_bf.astype(jnp.float32),
                        b_bf.astype(jnp.float32))
    out3 = jax.block_until_ready(masked_chem(x_bf, w_bf, b_bf))
    assert out3.dtype == jnp.bfloat16
    assert jnp.allclose(out3.astype(jnp.float32), ref_bf, atol=8e-2, rtol=3e-2), \
        "mismatch (bf16 path)"

    print("KERNEL_OK")
</pallas_src>

<mosaic_0001>
module attributes {stable_mosaic.version = 11 : i64} {
  func.func @kernel(%arg0: i32, %arg1: i32, %arg2: i32, %arg3: memref<16x32xf32, #tpu.memory_space<vmem>>, %arg4: memref<32x256xf32, #tpu.memory_space<vmem>>, %arg5: memref<1x256xf32, #tpu.memory_space<vmem>>, %arg6: memref<16x256xf32, #tpu.memory_space<vmem>>, %arg7: memref<16x1xf32, #tpu.memory_space<vmem>>, %arg8: memref<16x1xf32, #tpu.memory_space<vmem>>, %arg9: memref<16x1xf32, #tpu.memory_space<vmem>>, %arg10: memref<16x256xf32, #tpu.memory_space<vmem>>) attributes {dimension_semantics = [#tpu.dimension_semantics<parallel>, #tpu.dimension_semantics<arbitrary>, #tpu.dimension_semantics<arbitrary>], iteration_bounds = array<i64: 1, 2, 1>, scalar_prefetch = 0 : i64, scratch_operands = 4 : i64, tpu.core_type = #tpu.core_type<tc>, window_params = [{transform_indices = @transform_0, window_bounds = array<i64: 16, 32>}, {transform_indices = @transform_1, window_bounds = array<i64: 32, 256>}, {transform_indices = @transform_2, window_bounds = array<i64: 1, 256>}, {transform_indices = @transform_3, window_bounds = array<i64: 16, 256>}]} {
    %c0_i32 = arith.constant 0 : i32
    %0 = arith.cmpi eq, %arg1, %c0_i32 : i32
    %1 = arith.extui %0 : i1 to i32
    %c0_i32_0 = arith.constant 0 : i32
    %2 = arith.cmpi ne, %1, %c0_i32_0 : i32
    scf.if %2 {
      %c0 = arith.constant 0 : index
      %c0_2 = arith.constant 0 : index
      %6 = vector.load %arg3[%c0, %c0_2] : memref<16x32xf32, #tpu.memory_space<vmem>>, vector<16x32xf32>
      %c0_3 = arith.constant 0 : index
      %c0_4 = arith.constant 0 : index
      %7 = vector.load %arg4[%c0_3, %c0_4] : memref<32x256xf32, #tpu.memory_space<vmem>>, vector<32x256xf32>
      %cst = arith.constant dense<0.000000e+00> : vector<16x256xf32>
      %8 = tpu.matmul %6, %7, %cst {dimension_numbers = #tpu.dot_dimension_numbers<[1], [0], [0], [1], [0, 0, 1, 1], [], []>} : vector<16x32xf32>, vector<32x256xf32>, vector<16x256xf32> -> vector<16x256xf32>
      %c0_5 = arith.constant 0 : index
      %c0_6 = arith.constant 0 : index
      %9 = vector.load %arg5[%c0_5, %c0_6] : memref<1x256xf32, #tpu.memory_space<vmem>>, vector<1x256xf32>
      %10 = vector.broadcast %9 : vector<1x256xf32> to vector<16x256xf32>
      %11 = arith.addf %8, %10 : vector<16x256xf32>
      %12 = tpu.iota {dimensions = array<i32: 1>} : vector<16x256xi32>
      %c256_i32 = arith.constant 256 : i32
      %13 = arith.muli %arg2, %c256_i32 : i32
      %14 = vector.broadcast %13 : i32 to vector<16x256xi32>
      %15 = arith.addi %12, %14 : vector<16x256xi32>
      %c200_i32 = arith.constant 200 : i32
      %16 = vector.broadcast %c200_i32 : i32 to vector<16x256xi32>
      %17 = arith.cmpi slt, %15, %16 : vector<16x256xi32>
      %cst_7 = arith.constant -1.000000e+30 : f32
      %18 = vector.broadcast %cst_7 : f32 to vector<16x256xf32>
      %19 = arith.select %17, %11, %18 : vector<16x256xi1>, vector<16x256xf32>
      %c256_i32_8 = arith.constant 256 : i32
      %20 = arith.muli %arg2, %c256_i32_8 : i32
      %21 = tpu.assume_multiple %20, 256 : i32
      %c0_9 = arith.constant 0 : index
      %22 = arith.index_cast %21 : i32 to index
      %23 = vector.load %arg10[%c0_9, %22] : memref<16x256xf32, #tpu.memory_space<vmem>>, vector<16x256xf32>
      tpu.vector_store %arg10[%c0_9, %22], %19 {strides = array<i32>} : memref<16x256xf32, #tpu.memory_space<vmem>>, vector<16x256xf32>,
      %c0_i32_10 = arith.constant 0 : i32
      %24 = arith.cmpi eq, %arg2, %c0_i32_10 : i32
      %25 = arith.extui %24 : i1 to i32
      %c0_i32_11 = arith.constant 0 : i32
      %26 = arith.cmpi ne, %25, %c0_i32_11 : i32
      scf.if %26 {
        %cst_24 = arith.constant 0xFF800000 : f32
        %46 = vector.broadcast %cst_24 : f32 to vector<16x1xf32>
        %c0_25 = arith.constant 0 : index
        %c0_26 = arith.constant 0 : index
        %47 = vector.load %arg7[%c0_25, %c0_26] : memref<16x1xf32, #tpu.memory_space<vmem>>, vector<16x1xf32>
        tpu.vector_store %arg7[%c0_25, %c0_26], %46 {strides = array<i32>} : memref<16x1xf32, #tpu.memory_space<vmem>>, vector<16x1xf32>,
        %cst_27 = arith.constant 0.000000e+00 : f32
        %48 = vector.broadcast %cst_27 : f32 to vector<16x1xf32>
        %c0_28 = arith.constant 0 : index
        %c0_29 = arith.constant 0 : index
        %49 = vector.load %arg8[%c0_28, %c0_29] : memref<16x1xf32, #tpu.memory_space<vmem>>, vector<16x1xf32>
        tpu.vector_store %arg8[%c0_28, %c0_29], %48 {strides = array<i32>} : memref<16x1xf32, #tpu.memory_space<vmem>>, vector<16x1xf32>,
      } else {
      }
      %c0_12 = arith.constant 0 : index
      %c0_13 = arith.constant 0 : index
      %27 = vector.load %arg7[%c0_12, %c0_13] : memref<16x1xf32, #tpu.memory_space<vmem>>, vector<16x1xf32>
      %cst_14 = arith.constant dense<0xFF800000> : vector<16xf32>
      %28 = vector.multi_reduction <maximumf>, %19, %cst_14 [1] : vector<16x256xf32> to vector<16xf32>
      %29 = vector.shape_cast %28 : vector<16xf32> to vector<16x1xf32>
      %30 = arith.maximumf %27, %29 : vector<16x1xf32>
      %c0_15 = arith.constant 0 : index
      %c0_16 = arith.constant 0 : index
      %31 = vector.load %arg8[%c0_15, %c0_16] : memref<16x1xf32, #tpu.memory_space<vmem>>, vector<16x1xf32>
      %32 = arith.subf %27, %30 : vector<16x1xf32>
      %33 = math.exp %32 : vector<16x1xf32>
      %34 = arith.mulf %31, %33 : vector<16x1xf32>
      %35 = vector.broadcast %30 : vector<16x1xf32> to vector<16x256xf32>
      %36 = arith.subf %19, %35 : vector<16x256xf32>
      %37 = math.exp %36 : vector<16x256xf32>
      %cst_17 = arith.constant dense<0.000000e+00> : vector<16xf32>
      %38 = vector.multi_reduction <add>, %37, %cst_17 [1] : vector<16x256xf32> to vector<16xf32>
      %39 = vector.shape_cast %38 : vector<16xf32> to vector<16x1xf32>
      %40 = arith.addf %34, %39 : vector<16x1xf32>
      %c0_18 = arith.constant 0 : index
      %c0_19 = arith.constant 0 : index
      %41 = vector.load %arg8[%c0_18, %c0_19] : memref<16x1xf32, #tpu.memory_space<vmem>>, vector<16x1xf32>
      tpu.vector_store %arg8[%c0_18, %c0_19], %40 {strides = array<i32>} : memref<16x1xf32, #tpu.memory_space<vmem>>, vector<16x1xf32>,
      %c0_20 = arith.constant 0 : index
      %c0_21 = arith.constant 0 : index
      %42 = vector.load %arg7[%c0_20, %c0_21] : memref<16x1xf32, #tpu.memory_space<vmem>>, vector<16x1xf32>
      tpu.vector_store %arg7[%c0_20, %c0_21], %30 {strides = array<i32>} : memref<16x1xf32, #tpu.memory_space<vmem>>, vector<16x1xf32>,
      %c0_i32_22 = arith.constant 0 : i32
      %43 = arith.cmpi eq, %arg2, %c0_i32_22 : i32
      %44 = arith.extui %43 : i1 to i32
      %c0_i32_23 = arith.constant 0 : i32
      %45 = arith.cmpi ne, %44, %c0_i32_23 : i32
      scf.if %45 {
        %c0_24 = arith.constant 0 : index
        %c0_25 = arith.constant 0 : index
        %46 = vector.load %arg7[%c0_24, %c0_25] : memref<16x1xf32, #tpu.memory_space<vmem>>, vector<16x1xf32>
        %c0_26 = arith.constant 0 : index
        %c0_27 = arith.constant 0 : index
        %47 = vector.load %arg8[%c0_26, %c0_27] : memref<16x1xf32, #tpu.memory_space<vmem>>, vector<16x1xf32>
        %48 = math.log %47 : vector<16x1xf32>
        %49 = arith.addf %46, %48 : vector<16x1xf32>
        %c0_28 = arith.constant 0 : index
        %c0_29 = arith.constant 0 : index
        %50 = vector.load %arg9[%c0_28, %c0_29] : memref<16x1xf32, #tpu.memory_space<vmem>>, vector<16x1xf32>
        tpu.vector_store %arg9[%c0_28, %c0_29], %49 {strides = array<i32>} : memref<16x1xf32, #tpu.memory_space<vmem>>, vector<16x1xf32>,
      } else {
      }
    } else {
    }
    %c1_i32 = arith.constant 1 : i32
    %3 = arith.cmpi eq, %arg1, %c1_i32 : i32
    %4 = arith.extui %3 : i1 to i32
    %c0_i32_1 = arith.constant 0 : i32
    %5 = arith.cmpi ne, %4, %c0_i32_1 : i32
    scf.if %5 {
      %c256_i32 = arith.constant 256 : i32
      %6 = arith.muli %arg2, %c256_i32 : i32
      %7 = tpu.assume_multiple %6, 256 : i32
      %c0 = arith.constant 0 : index
      %8 = arith.index_cast %7 : i32 to index
      %9 = vector.load %arg10[%c0, %8] : memref<16x256xf32, #tpu.memory_space<vmem>>, vector<16x256xf32>
      %c0_2 = arith.constant 0 : index
      %c0_3 = arith.constant 0 : index
      %10 = vector.load %arg9[%c0_2, %c0_3] : memref<16x1xf32, #tpu.memory_space<vmem>>, vector<16x1xf32>
      %11 = vector.broadcast %10 : vector<16x1xf32> to vector<16x256xf32>
      %12 = arith.subf %9, %11 : vector<16x256xf32>
      %c0_4 = arith.constant 0 : index
      %c0_5 = arith.constant 0 : index
      %13 = vector.load %arg6[%c0_4, %c0_5] : memref<16x256xf32, #tpu.memory_space<vmem>>, vector<16x256xf32>
      tpu.vector_store %arg6[%c0_4, %c0_5], %12 {strides = array<i32>} : memref<16x256xf32, #tpu.memory_space<vmem>>, vector<16x256xf32>,
    } else {
    }
    return
  }
  func.func @transform_0(%arg0: i32, %arg1: i32, %arg2: i32) -> (i32, i32) {
    %c0_i32 = arith.constant 0 : i32
    %c0_i32_0 = arith.constant 0 : i32
    return %arg0, %c0_i32 : i32, i32
  }
  func.func @transform_1(%arg0: i32, %arg1: i32, %arg2: i32) -> (i32, i32) {
    %c1_i32 = arith.constant 1 : i32
    %0 = arith.subi %c1_i32, %arg1 : i32
    %1 = arith.muli %arg2, %0 : i32
    %c0_i32 = arith.constant 0 : i32
    %2 = arith.muli %c0_i32, %arg1 : i32
    %3 = arith.addi %1, %2 : i32
    %c0_i32_0 = arith.constant 0 : i32
    %c0_i32_1 = arith.constant 0 : i32
    return %c0_i32_0, %3 : i32, i32
  }
  func.func @transform_2(%arg0: i32, %arg1: i32, %arg2: i32) -> (i32, i32) {
    %c1_i32 = arith.constant 1 : i32
    %0 = arith.subi %c1_i32, %arg1 : i32
    %1 = arith.muli %arg2, %0 : i32
    %c0_i32 = arith.constant 0 : i32
    %2 = arith.muli %c0_i32, %arg1 : i32
    %3 = arith.addi %1, %2 : i32
    %c0_i32_0 = arith.constant 0 : i32
    %c0_i32_1 = arith.constant 0 : i32
    return %c0_i32_0, %3 : i32, i32
  }
  func.func @transform_3(%arg0: i32, %arg1: i32, %arg2: i32) -> (i32, i32) {
    %0 = arith.muli %arg2, %arg1 : i32
    %c0_i32 = arith.constant 0 : i32
    return %arg0, %0 : i32, i32
  }
}

</mosaic_0001>

<llo_original>
// kernel: tpu_custom_call.1
$region0: #{tpu_custom_call.1}
  #allocation0 [shape = 'u32[]', space=smem, size = 0x4, offset = 0x4, fixed_abs, tag = 'smem constant byte address 0x4 - core index']
  #allocation1 [shape = 'u32[144,128]{1,0:T(1,128)}', space=vmem, size = 0x12000, scoped, tag = 'internal scratch']
  #allocation2 [shape = 'f32[16,1]{1,0:T(8,128)}', space=vmem, size = 0x2000, scoped, tag = 'scratch operand']
  #allocation3 [shape = 'f32[16,1]{1,0:T(8,128)}', space=vmem, size = 0x2000, scoped, tag = 'scratch operand']
  #allocation4 [shape = 'f32[16,1]{1,0:T(8,128)}', space=vmem, size = 0x2000, scoped, tag = 'scratch operand']
  #allocation5 [shape = 'f32[16,256]{1,0:T(8,128)}', space=vmem, size = 0x4000, scoped, tag = 'scratch operand']
  %s0 = inlined_call_operand.hbm [shape: f32[14,32], index: 0, kind: input, shape index: {}]
  %s1 = inlined_call_operand.hbm [shape: f32[32,200], index: 1, kind: input, shape index: {}]
  %s2 = inlined_call_operand.vmem [shape: f32[1,256], index: 2, kind: input, shape index: {}]
  %s3 = inlined_call_operand.hbm [shape: f32[14,200], index: 3, kind: output, shape index: {}]
  %s4 = sld [smem:[#allocation0]]
  $region69: #{tpu_custom_call.1} parent=0
    _
  %s6 = ssub.s32 1, %s4
  %s7 = scalar_select 0, %s6, %s4
  $region1: #{tpu_custom_call.1} parent=0
    #allocation6 [shape = 'u8[8192]{0}', space=vmem, size = 0x2000, scoped, tag = 'input window, operand 0, single buffered']
    #allocation7 [shape = 's32[2]{0}', space=sflag, size = 0x8, scoped, tag = 'scoped memory for tpu_custom_call.1']
    #allocation8 [shape = 's32[2]{0}', space=sflag, size = 0x8, scoped, tag = 'scoped memory for tpu_custom_call.1']
    #allocation9 [shape = 'u8[65536]{0}', space=vmem, size = 0x10000, scoped, tag = 'input window, operand 1']
    #allocation10 [shape = 's32[2]{0}', space=sflag, size = 0x8, scoped, tag = 'scoped memory for tpu_custom_call.1']
    #allocation11 [shape = 'u8[32768]{0}', space=vmem, size = 0x8000, scoped, tag = 'output window, operand 0']
    %8 = vsyncpa [#allocation7], 0
    %9 = vsyncpa [#allocation10], 0
    %s10 = scalar_lea.sflag [#allocation10], 1
    %11 = vsyncpa %s10, 0
    %12 = vsyncpa [#allocation8], 0
    %s13 = scalar_lea.sflag [#allocation8], 1
    %14 = vsyncpa %s13, 0
    loop: start=0, step=1, limit=4
    $region2: #{tpu_custom_call.1} parent=1 // loop_pre_header
      _
    $region3: #{tpu_custom_call.1} parent=1 // loop_header
      %s16 = sphi 0, %s20
      %p17 = scmp.ge.s32.totalorder %s16, 4
      %s23 = sphi 0, %s42
      %s24 = sphi 0, %s38
      %s25 = sphi 0, %s34
      %s26 = sphi 0, %s23
      %s27 = sphi 0, %s24
      %s28 = sphi 0, %s25
      %s29 = sphi 0, %s26
      %s30 = sphi 0, %s27
      %s31 = sphi 0, %s28
      %s45 = sphi 0, %s47
      %s48 = sphi 0, %s45
      %s49 = sphi 0, %s48
      %s65 = sphi 0, %s49
      %s75 = sphi 0, %s77
      %s78 = sphi 0, %s75
      %s79 = sphi 0, %s78
      %s95 = sphi 0, %s79
      %s105 = sphi 0, %s107
      %s108 = sphi 0, %s105
      %s109 = sphi 0, %s108
      %s125 = sphi 0, %s109
      %s135 = sphi 0, %s137
      %s138 = sphi 0, %s135
      %s139 = sphi 0, %s138
      %s155 = sphi 0, %s139
    $region4: #{tpu_custom_call.1} parent=1 // loop_header_branch
      %19 = sbr.rel (%p17) target = $region8
    $region5: #{tpu_custom_call.1} parent=1 // loop_body
      %s21 = ssub.s32 %s16, 1
      %s22 = ssub.s32 %s16, 2
      %s32 = sadd.s32 1, %s25
      %p33 = scmp.ge.s32.totalorder %s32, 1
      %s34 = scalar_select %p33, 0, %s32
      %s35 = sadd.s32 1, %s24
      %s36 = scalar_select %p33, %s35, %s24
      %p37 = scmp.ge.s32.totalorder %s36, 2
      %s38 = scalar_select %p37, 0, %s36
      %s39 = sadd.s32 1, %s23
      %s40 = scalar_select %p37, %s39, %s23
      %p41 = scmp.ge.s32.totalorder %s40, 1
      %s42 = scalar_select %p41, 0, %s40
      %s43 = ssub.s32 %s23, %s42
      %p44 = scmp.eq.s32.totalorder %s43, 0
      %s46 = sadd.s32 %s45, 1
      %s47 = scalar_select %p44, %s45, %s46
      %p50 = pneg %p44
      %p51 = scmp.eq.s32.totalorder %s16, 1
      %p52 = por %p50, %p51
      %p53 = scmp.ne.s32.totalorder %s45, %s48
      %p54 = scmp.eq.s32.totalorder %s16, 0
      %p55 = por %p53, %p54
      %p56 = scmp.ne.s32.totalorder %s45, %s48
      %p57 = scmp.eq.s32.totalorder %s21, 1
      %p58 = por %p56, %p57
      %p59 = scmp.ne.s32.totalorder %s48, %s49
      %p60 = scmp.eq.s32.totalorder %s21, 0
      %p61 = por %p59, %p60
      %p62 = scmp.ne.s32.totalorder %s48, %s49
      %p63 = scmp.eq.s32.totalorder %s22, 1
      %p64 = por %p62, %p63
      %p66 = scmp.ne.s32.totalorder %s49, %s65
      %p67 = scmp.eq.s32.totalorder %s22, 0
      %p68 = por %p66, %p67
      %s69 = ssub.s32 1, %s24
      %s70 = smul.u32 %s25, %s69
      %s71 = ssub.s32 1, %s38
      %s72 = smul.u32 %s34, %s71
      %s73 = ssub.s32 %s70, %s72
      %p74 = scmp.eq.s32.totalorder %s73, 0
      %s76 = sadd.s32 %s75, 1
      %s77 = scalar_select %p74, %s75, %s76
      %p80 = pneg %p74
      %p81 = scmp.eq.s32.totalorder %s16, 1
      %p82 = por %p80, %p81
      %p83 = scmp.ne.s32.totalorder %s75, %s78
      %p84 = scmp.eq.s32.totalorder %s16, 0
      %p85 = por %p83, %p84
      %p86 = scmp.ne.s32.totalorder %s75, %s78
      %p87 = scmp.eq.s32.totalorder %s21, 1
      %p88 = por %p86, %p87
      %p89 = scmp.ne.s32.totalorder %s78, %s79
      %p90 = scmp.eq.s32.totalorder %s21, 0
      %p91 = por %p89, %p90
      %p92 = scmp.ne.s32.totalorder %s78, %s79
      %p93 = scmp.eq.s32.totalorder %s22, 1
      %p94 = por %p92, %p93
      %p96 = scmp.ne.s32.totalorder %s79, %s95
      %p97 = scmp.eq.s32.totalorder %s22, 0
      %p98 = por %p96, %p97
      %s99 = ssub.s32 1, %s24
      %s100 = smul.u32 %s25, %s99
      %s101 = ssub.s32 1, %s38
      %s102 = smul.u32 %s34, %s101
      %s103 = ssub.s32 %s100, %s102
      %p104 = scmp.eq.s32.totalorder %s103, 0
      %s106 = sadd.s32 %s105, 1
      %s107 = scalar_select %p104, %s105, %s106
      %p110 = pneg %p104
      %p111 = scmp.eq.s32.totalorder %s16, 1
      %p112 = por %p110, %p111
      %p113 = scmp.ne.s32.totalorder %s105, %s108
      %p114 = scmp.eq.s32.totalorder %s16, 0
      %p115 = por %p113, %p114
      %p116 = scmp.ne.s32.totalorder %s105, %s108
      %p117 = scmp.eq.s32.totalorder %s21, 1
      %p118 = por %p116, %p117
      %p119 = scmp.ne.s32.totalorder %s108, %s109
      %p120 = scmp.eq.s32.totalorder %s21, 0
      %p121 = por %p119, %p120
      %p122 = scmp.ne.s32.totalorder %s108, %s109
      %p123 = scmp.eq.s32.totalorder %s22, 1
      %p124 = por %p122, %p123
      %p126 = scmp.ne.s32.totalorder %s109, %s125
      %p127 = scmp.eq.s32.totalorder %s22, 0
      %p128 = por %p126, %p127
      %s129 = smul.u32 %s25, %s24
      %s130 = smul.u32 %s34, %s38
      %s131 = ssub.s32 %s23, %s42
      %s132 = ssub.s32 %s129, %s130
      %s133 = sor.u32 %s131, %s132
      %p134 = scmp.eq.s32.totalorder %s133, 0
      %s136 = sadd.s32 %s135, 1
      %s137 = scalar_select %p134, %s135, %s136
      %p140 = pneg %p134
      %p141 = scmp.eq.s32.totalorder %s16, 1
      %p142 = por %p140, %p141
      %p143 = scmp.ne.s32.totalorder %s135, %s138
      %p144 = scmp.eq.s32.totalorder %s16, 0
      %p145 = por %p143, %p144
      %p146 = scmp.ne.s32.totalorder %s135, %s138
      %p147 = scmp.eq.s32.totalorder %s21, 1
      %p148 = por %p146, %p147
      %p149 = scmp.ne.s32.totalorder %s138, %s139
      %p150 = scmp.eq.s32.totalorder %s21, 0
      %p151 = por %p149, %p150
      %p152 = scmp.ne.s32.totalorder %s138, %s139
      %p153 = scmp.eq.s32.totalorder %s22, 1
      %p154 = por %p152, %p153
      %p156 = scmp.ne.s32.totalorder %s139, %s155
      %p157 = scmp.eq.s32.totalorder %s22, 0
      %p158 = por %p156, %p157
      %p159 = scmp.le.s32.totalorder 1, %s16
      %p160 = scmp.lt.s32.totalorder %s16, 3
      %p161 = pnand %p159, %p160
      %p162 = pneg %p161
      // Predicated region
      $region9: #{tpu_custom_call.1} parent=5 // pred_check
        _
      $region10: #{tpu_custom_call.1} parent=5 // pred_check_branch
        %164 = sbr.rel (%p161) target = $region12
      $region11: #{tpu_custom_call.1} parent=5 // pred_region
        %s165 = ssub.s32 %s16, 1
        // Predicated region
        $region13: #{tpu_custom_call.1} parent=11 // pred_check
          %p166 = pneg %p61
        $region14: #{tpu_custom_call.1} parent=11 // pred_check_branch
          %168 = sbr.rel (%p166) target = $region16
        $region15: #{tpu_custom_call.1} parent=11 // pred_region
          %s169 = smul.u32 2, %s26
          %s171 = ssub.s32 256, 256
          %172 = vsyncadd [#allocation7], %s171
          %s173 = smul.addr %s169, 128
          %s174 = scalar_lea.hbm %s0, %s173
          %s175 = sshll.u32 [#allocation6], 4
          %s176 = int_to_ptr.vmem [resolvable:$true] %s175
          %181 = dma.hbm_to_vmem [thread:$0]  %s174, 256, %s176, [#allocation7], 128, 128, 8
        $region16: #{tpu_custom_call.1} parent=11 // pred_fallthru
          _
      $region12: #{tpu_custom_call.1} parent=5 // pred_fallthru
        _
      %p182 = scmp.lt.s32.totalorder %s16, 2
      // Predicated region
      $region17: #{tpu_custom_call.1} parent=5 // pred_check
        %p183 = pneg %p182
      $region18: #{tpu_custom_call.1} parent=5 // pred_check_branch
        %185 = sbr.rel (%p183) target = $region20
      $region19: #{tpu_custom_call.1} parent=5 // pred_region
        // Predicated region
        $region21: #{tpu_custom_call.1} parent=19 // pred_check
          %p186 = pneg %p85
        $region22: #{tpu_custom_call.1} parent=19 // pred_check_branch
          %188 = sbr.rel (%p186) target = $region24
        $region23: #{tpu_custom_call.1} parent=19 // pred_region
          %s189 = sand.u32 %s75, 1
          %s190 = scalar_lea.sflag [#allocation10], %s189
          %s191 = sand.u32 %s75, 1
          %s192 = smul.addr %s191, 64
          %s193 = scalar_lea.vmem [#allocation9], %s192
          %s194 = ssub.s32 1, %s24
          %s195 = smul.u32 %s25, %s194
          %s196 = smul.u32 2, %s195
          %s198 = ssub.s32 1024, 1024
          %199 = vsyncadd %s190, %s198
          %s200 = smul.addr %s196, 128
          %s201 = scalar_lea.hbm %s1, %s200
          %s202 = sshll.u32 %s193, 4
          %s203 = int_to_ptr.vmem [resolvable:$true] %s202
          %208 = dma.hbm_to_vmem [thread:$0]  %s201, 1024, %s203, %s190, 256, 256, 16
        $region24: #{tpu_custom_call.1} parent=19 // pred_fallthru
          _
        // Predicated region
        $region25: #{tpu_custom_call.1} parent=19 // pred_check
          %p209 = pneg %p115
        $region26: #{tpu_custom_call.1} parent=19 // pred_check_branch
          %211 = sbr.rel (%p209) target = $region28
        $region27: #{tpu_custom_call.1} parent=19 // pred_region
          %s212 = ssub.s32 1, %s24
          %s213 = smul.u32 %s25, %s212
          %s214 = smul.u32 2, %s213
          %p215 = scmp.lt.s32.totalorder %s214, 1
          %s216 = scalar_select %p215, %s214, 1
          %s217 = scalar_lea.vmem %s2, %s216
          %s218 = ssub.s32 1, %s24
          %s219 = smul.u32 %s25, %s218
          %s220 = smul.u32 2, %s219
        $region28: #{tpu_custom_call.1} parent=19 // pred_fallthru
          _
      $region20: #{tpu_custom_call.1} parent=5 // pred_fallthru
        _
      %p221 = scmp.le.s32.totalorder 1, %s16
      %p222 = scmp.lt.s32.totalorder %s16, 3
      %p223 = pnand %p221, %p222
      %p224 = pneg %p223
      // Predicated region
      $region29: #{tpu_custom_call.1} parent=5 // pred_check
        _
      $region30: #{tpu_custom_call.1} parent=5 // pred_check_branch
        %226 = sbr.rel (%p223) target = $region32
      $region31: #{tpu_custom_call.1} parent=5 // pred_region
        %s227 = ssub.s32 %s16, 1
        // Predicated region
        $region33: #{tpu_custom_call.1} parent=31 // pred_check
          %p228 = pneg %p61
        $region34: #{tpu_custom_call.1} parent=31 // pred_check_branch
          %230 = sbr.rel (%p228) target = $region36
        $region35: #{tpu_custom_call.1} parent=31 // pred_region
          %231 = dma.done [#allocation7], 256
        $region36: #{tpu_custom_call.1} parent=31 // pred_fallthru
          _
        %s232 = sand.u32 %s78, 1
        %s233 = scalar_lea.sflag [#allocation10], %s232
        %s234 = sand.u32 %s78, 1
        %s235 = smul.addr %s234, 64
        %s236 = scalar_lea.vmem [#allocation9], %s235
        // Predicated region
        $region37: #{tpu_custom_call.1} parent=31 // pred_check
          %p237 = pneg %p91
        $region38: #{tpu_custom_call.1} parent=31 // pred_check_branch
          %239 = sbr.rel (%p237) target = $region40
        $region39: #{tpu_custom_call.1} parent=31 // pred_region
          %240 = dma.done %s233, 1024
        $region40: #{tpu_custom_call.1} parent=31 // pred_fallthru
          _
        %p241 = pneg %p61
        %p242 = pneg %p58
        %s243 = sand.u32 %s78, 1
        %s244 = scalar_lea.sflag [#allocation10], %s243
        %s245 = sand.u32 %s78, 1
        %s246 = smul.addr %s245, 64
        %s247 = scalar_lea.vmem [#allocation9], %s246
        %p248 = pneg %p91
        %p249 = pneg %p88
        %s250 = ssub.s32 1, %s27
        %s251 = smul.u32 %s28, %s250
        %s252 = smul.u32 2, %s251
        %p253 = scmp.lt.s32.totalorder %s252, 1
        %s254 = scalar_select %p253, %s252, 1
        %s255 = scalar_lea.vmem %s2, %s254
        %p256 = pneg %p121
        %p257 = pneg %p118
        %p258 = pneg %p151
        %p259 = pneg %p148
        %s260 = sand.u32 %s138, 1
        %s261 = scalar_lea.sflag [#allocation8], %s260
        %s262 = sand.u32 %s138, 1
        %s263 = smul.addr %s262, 32
        %s264 = scalar_lea.vmem [#allocation11], %s263
        %s265 = smul.u32 2, %s26
        %s266 = ssub.s32 1, %s27
        %s267 = smul.u32 %s28, %s266
        %s268 = smul.u32 2, %s267
        %s269 = ssub.s32 1, %s27
        %s270 = smul.u32 %s28, %s269
        %s271 = smul.u32 2, %s270
        %p272 = scmp.lt.s32.totalorder %s271, 1
        %s273 = scalar_select %p272, %s271, 1
        %s274 = scalar_lea.vmem %s2, %s273
        %s275 = ssub.s32 1, %s27
        %s276 = smul.u32 %s28, %s275
        %s277 = smul.u32 2, %s276
        %s278 = smul.u32 %s28, %s27
        %s279 = smul.u32 2, %s26
        %s280 = smul.u32 2, %s278
        %p281 = scmp.eq.s32.totalorder %s27, 0
        // Predicated region
        $region41: #{tpu_custom_call.1} parent=31 // pred_check
          %p282 = pneg %p281
        $region42: #{tpu_custom_call.1} parent=31 // pred_check_branch
          %284 = sbr.rel (%p282) target = $region44
        $region43: #{tpu_custom_call.1} parent=31 // pred_region
          %v285 = vld [vmem:[#allocation6] sm:$0xff]
          %v286 = vld [vmem:[#allocation6 + $0x8] sm:$0xff]
          %v287 = vld [vmem:[%s236] sm:$0xff]
          %v288 = vld [vmem:[%s236 + $0x8] sm:$0xff]
          %v289 = vld [vmem:[%s236 + $0x10] sm:$0xff]
          %v290 = vld [vmem:[%s236 + $0x18] sm:$0xff]
          %v291 = vld [vmem:[%s236 + $0x20] sm:$0xff]
          %v292 = vld [vmem:[%s236 + $0x28] sm:$0xff]
          %v293 = vld [vmem:[%s236 + $0x30] sm:$0xff]
          %v294 = vld [vmem:[%s236 + $0x38] sm:$0xff]
          %v295 = vld [vmem:[%s274] sm:$0x3]
          %v297 = vlaneseq
          %v298 = vshrl.u32 %v297, 7
          %v299 = vsub.s32 0, %v298
          %v300 = vrot.slane %v295, %v299
          %v301 = vlaneseq
          %v302 = vshrl.u32 %v301, 7
          %v303 = vsub.s32 1, %v302
          %v304 = vrot.slane %v295, %v303
          %vm307 = vcmask 261120
          %v309 = vsel %vm307, %v285, 0
          %v312 = vsel %vm307, %v286, 0
          %314 = vmatprep.subr.mxu0 %v288
          %315 = vmatpush1.msra.mxu0 %v287
          %316 = vmatprep.subr.mxu0 %v290
          %317 = vmatpush1.msra.mxu0 %v289
          %318 = vmatprep.subr.mxu0 %v292
          %319 = vmatpush1.msra.mxu0 %v291
          %320 = vmatprep.subr.mxu0 %v294
          %321 = vmatpush1.msra.mxu0 %v293
          %322 = vmatprep.subr.mxu0 0.0
          %323 = vmatpush1.msra.mxu0 0.0
          %324 = vmatprep.subr.mxu0 0.0
          %325 = vmatpush1.msra.mxu0 0.0
          %326 = vmatprep.subr.mxu0 0.0
          %327 = vmatpush1.msra.mxu0 0.0
          %328 = vmatprep.subr.mxu0 0.0
          %329 = vmatpush1.msra.mxu0 0.0
          %330 = vmatprep.subr.mxu0 0.0
          %331 = vmatpush1.msra.mxu0 0.0
          %332 = vmatprep.subr.mxu0 0.0
          %333 = vmatpush1.msra.mxu0 0.0
          %334 = vmatprep.subr.mxu0 0.0
          %335 = vmatpush1.msra.mxu0 0.0
          %336 = vmatprep.subr.mxu0 0.0
          %337 = vmatpush1.msra.mxu0 0.0
          %338 = vmatprep.subr.mxu0 0.0
          %339 = vmatpush1.msra.mxu0 0.0
          %340 = vmatprep.subr.mxu0 0.0
          %341 = vmatpush1.msra.mxu0 0.0
          %342 = vmatprep.subr.mxu0 0.0
          %343 = vmatpush1.msra.mxu0 0.0
          %344 = vmatprep.subr.mxu0 0.0
          %345 = vmatpush1.msra.mxu0 0.0
          %346 = vmatprep.subr.mxu0 0.0
          %347 = vmatpush1.msra.mxu0 0.0
          %348 = vmatprep.subr.mxu0 0.0
          %349 = vmatpush1.msra.mxu0 0.0
          %350 = vmatprep.subr.mxu0 0.0
          %351 = vmatpush1.msra.mxu0 0.0
          %352 = vmatprep.subr.mxu0 0.0
          %353 = vmatpush1.msra.mxu0 0.0
          %354 = vmatprep.subr.mxu0 0.0
          %355 = vmatpush1.msra.mxu0 0.0
          %356 = vmatprep.subr.mxu0 0.0
          %357 = vmatpush1.msra.mxu0 0.0
          %358 = vmatprep.subr.mxu0 0.0
          %359 = vmatpush1.msra.mxu0 0.0
          %360 = vmatprep.subr.mxu0 0.0
          %361 = vmatpush1.msra.mxu0 0.0
          %362 = vmatprep.subr.mxu0 0.0
          %363 = vmatpush1.msra.mxu0 0.0
          %364 = vmatprep.subr.mxu0 0.0
          %365 = vmatpush1.msra.mxu0 0.0
          %366 = vmatprep.subr.mxu0 0.0
          %367 = vmatpush1.msra.mxu0 0.0
          %368 = vmatprep.subr.mxu0 0.0
          %369 = vmatpush1.msra.mxu0 0.0
          %370 = vmatprep.subr.mxu0 0.0
          %371 = vmatpush1.msra.mxu0 0.0
          %372 = vmatprep.subr.mxu0 0.0
          %373 = vmatpush1.msra.mxu0 0.0
          %374 = vmatprep.subr.mxu0 0.0
          %375 = vmatpush1.msra.mxu0 0.0
          %376 = vmatprep.subr.mxu0 0.0
          %377 = vmatpush1.msra.mxu0 0.0
          %378 = vmatprep.mubr.f32.mxu0 0.0
          %379 = vmatmul.mubr.f32.gmra.mrb[0].mxu0 %v309
          %v380 = vpop.f32.mrb[0].mxu0
          %v381 = vadd.f32 %v300, %v380
          %v382 = vpop.f32.mrb[0].mxu0
          %v383 = vadd.f32 %v304, %v382
          %384 = vmatprep.mubr.f32.mxu0 0.0
          %385 = vmatmul.mubr.f32.gmra.mrb[0].mxu0 %v312
          %v386 = vpop.f32.mrb[0].mxu0
          %v387 = vadd.f32 %v300, %v386
          %v388 = vpop.f32.mrb[0].mxu0
          %v389 = vadd.f32 %v304, %v388
          %390 = vdwg.mxu0
          %v391 = vlaneseq
          %v392 = vand.u32 %v391, 127
          %v393 = vadd.s32 %v392, 128
          %s394 = smul.u32 %s28, 256
          %v395 = vstv %s394
          %v396 = vadd.s32 %v392, %v395
          %v397 = vadd.s32 %v393, %v395
          %vm398 = vcmp.lt.s32.totalorder %v396, 200
          %vm399 = vcmp.lt.s32.totalorder %v397, 200
          %v400 = vsel %vm398, %v381, -1e+30
          %v401 = vsel %vm399, %v383, -1e+30
          %v402 = vsel %vm398, %v387, -1e+30
          %v403 = vsel %vm399, %v389, -1e+30
          %s404 = sshra.s32 %s394, 7
          %s405 = sand.u32 %s394, 127
          %s406 = smul.addr %s404, 8
          %s407 = scalar_lea.vmem [#allocation5], %s406
          %408 = vst [vmem:[%s407] sm:$0xff] %v400
          %409 = vst [vmem:[%s407 + $0x8] sm:$0xff] %v401
          %410 = vst [vmem:[%s407 + $0x10] sm:$0xff] %v402
          %411 = vst [vmem:[%s407 + $0x18] sm:$0xff] %v403
          %p412 = scmp.eq.s32.totalorder %s28, 0
          // Predicated region
          $region45: #{tpu_custom_call.1} parent=43 // pred_check
            %p413 = pneg %p412
          $region46: #{tpu_custom_call.1} parent=43 // pred_check_branch
            %415 = sbr.rel (%p413) target = $region48
          $region47: #{tpu_custom_call.1} parent=43 // pred_region
            %vm416 = vcmask 7168
            %417 = vst.msk [vmem:[#allocation2] sm:$0xff] %vm416, -inf
            %418 = vst.msk [vmem:[#allocation2 + $0x8] sm:$0xff] %vm416, -inf
            %419 = vst.msk [vmem:[#allocation3] sm:$0xff] %vm416, 0.0
            %420 = vst.msk [vmem:[#allocation3 + $0x8] sm:$0xff] %vm416, 0.0
          $region48: #{tpu_custom_call.1} parent=43 // pred_fallthru
            _
          %v421 = vld [vmem:[#allocation2] sm:$0xff]
          %v422 = vld [vmem:[#allocation2 + $0x8] sm:$0xff]
          %v423 = vmax.f32 %v400, %v401
          %424 = vmax.xlane.f32.xlu0 %v423
          %v425 = vpop.xlane.xlu0 %424
          %v426 = vmax.f32 %v402, %v403
          %427 = vmax.xlane.f32.xlu0 %v426
          %v428 = vpop.xlane.xlu0 %427
          %v429 = vmax.f32 %v421, %v425
          %v430 = vmax.f32 %v422, %v428
          %v431 = vld [vmem:[#allocation3] sm:$0xff]
          %v432 = vld [vmem:[#allocation3 + $0x8] sm:$0xff]
          %v433 = vsub.f32 %v421, %v429
          %v434 = vsub.f32 %v422, %v430
          %v435 = vmul.f32 %v433, 1.442695
          %v436 = vpow.pop %v435
          %v437 = vmul.f32 %v434, 1.442695
          %v438 = vpow.pop %v437
          %v439 = vmul.f32 %v431, %v436
          %v440 = vmul.f32 %v432, %v438
          %442 = vset.pattern.permute.xlu0 0
          %443 = vperm.xlu0 %442, %v429
          %v444 = vpop.permute.xlu0 %443
          %447 = vset.pattern.permute.xlu0 0
          %448 = vperm.xlu0 %447, %v430
          %v449 = vpop.permute.xlu0 %448
          %v451 = vsub.f32 %v400, %v444
          %v452 = vsub.f32 %v401, %v444
          %v453 = vsub.f32 %v402, %v449
          %v454 = vsub.f32 %v403, %v449
          %v455 = vmul.f32 %v451, 1.442695
          %v456 = vpow.pop %v455
          %v457 = vmul.f32 %v452, 1.442695
          %v458 = vpow.pop %v457
          %v459 = vmul.f32 %v453, 1.442695
          %v460 = vpow.pop %v459
          %v461 = vmul.f32 %v454, 1.442695
          %v462 = vpow.pop %v461
          %v463 = vadd.f32 %v456, %v458
          %464 = vadd.xlane.f32.xlu0 %v463
          %v465 = vpop.xlane.xlu0 %464
          %v466 = vadd.f32 %v460, %v462
          %467 = vadd.xlane.f32.xlu0 %v466
          %v468 = vpop.xlane.xlu0 %467
          %v469 = vadd.f32 %v439, %v465
          %v470 = vadd.f32 %v440, %v468
          %vm471 = vcmask 7168
          %472 = vst.msk [vmem:[#allocation3] sm:$0xff] %vm471, %v469
          %473 = vst.msk [vmem:[#allocation3 + $0x8] sm:$0xff] %vm471, %v470
          %474 = vst.msk [vmem:[#allocation2] sm:$0xff] %vm471, %v429
          %475 = vst.msk [vmem:[#allocation2 + $0x8] sm:$0xff] %vm471, %v430
          // Predicated region
          $region49: #{tpu_custom_call.1} parent=43 // pred_check
            %p476 = pneg %p412
          $region50: #{tpu_custom_call.1} parent=43 // pred_check_branch
            %478 = sbr.rel (%p476) target = $region52
          $region51: #{tpu_custom_call.1} parent=43 // pred_region
            %v479 = vld [vmem:[#allocation2] sm:$0xff]
            %v480 = vld [vmem:[#allocation2 + $0x8] sm:$0xff]
            %v481 = vld [vmem:[#allocation3] sm:$0xff]
            %v482 = vld [vmem:[#allocation3 + $0x8] sm:$0xff]
            %v483 = vlog2.pop %v481
            %v484 = vmul.f32 %v483, 0.6931472
            %v485 = vlog2.pop %v482
            %v486 = vmul.f32 %v485, 0.6931472
            %v487 = vadd.f32 %v479, %v484
            %v488 = vadd.f32 %v480, %v486
            %489 = vst.msk [vmem:[#allocation4] sm:$0xff] %vm471, %v487
            %490 = vst.msk [vmem:[#allocation4 + $0x8] sm:$0xff] %vm471, %v488
          $region52: #{tpu_custom_call.1} parent=43 // pred_fallthru
            _
        $region44: #{tpu_custom_call.1} parent=31 // pred_fallthru
          _
        %p491 = scmp.eq.s32.totalorder %s27, 1
        // Predicated region
        $region53: #{tpu_custom_call.1} parent=31 // pred_check
          %p492 = pneg %p491
        $region54: #{tpu_custom_call.1} parent=31 // pred_check_branch
          %494 = sbr.rel (%p492) target = $region56
        $region55: #{tpu_custom_call.1} parent=31 // pred_region
          %s495 = smul.u32 %s28, 256
          %s496 = sshra.s32 %s495, 7
          %s497 = sand.u32 %s495, 127
          %s498 = smul.addr %s496, 8
          %s499 = scalar_lea.vmem [#allocation5], %s498
          %v500 = vld [vmem:[%s499] sm:$0xff]
          %v501 = vld [vmem:[%s499 + $0x8] sm:$0xff]
          %v502 = vld [vmem:[%s499 + $0x10] sm:$0xff]
          %v503 = vld [vmem:[%s499 + $0x18] sm:$0xff]
          %v504 = vld [vmem:[#allocation4] sm:$0xff]
          %v505 = vld [vmem:[#allocation4 + $0x8] sm:$0xff]
          %507 = vset.pattern.permute.xlu0 0
          %508 = vperm.xlu0 %507, %v504
          %v509 = vpop.permute.xlu0 %508
          %512 = vset.pattern.permute.xlu0 0
          %513 = vperm.xlu0 %512, %v505
          %v514 = vpop.permute.xlu0 %513
          %v516 = vsub.f32 %v500, %v509
          %v517 = vsub.f32 %v501, %v509
          %v518 = vsub.f32 %v502, %v514
          %v519 = vsub.f32 %v503, %v514
          %520 = vst [vmem:[%s264] sm:$0xff] %v516
          %521 = vst [vmem:[%s264 + $0x8] sm:$0xff] %v517
          %522 = vst [vmem:[%s264 + $0x10] sm:$0xff] %v518
          %523 = vst [vmem:[%s264 + $0x18] sm:$0xff] %v519
        $region56: #{tpu_custom_call.1} parent=31 // pred_fallthru
          _
        %s524 = sand.u32 %s138, 1
        %s525 = scalar_lea.sflag [#allocation8], %s524
        %s526 = sand.u32 %s138, 1
        %s527 = smul.addr %s526, 32
        %s528 = scalar_lea.vmem [#allocation11], %s527
        // Predicated region
        $region57: #{tpu_custom_call.1} parent=31 // pred_check
          %p529 = pneg %p148
        $region58: #{tpu_custom_call.1} parent=31 // pred_check_branch
          %531 = sbr.rel (%p529) target = $region60
        $region59: #{tpu_custom_call.1} parent=31 // pred_region
          %s532 = smul.u32 %s28, %s27
          %s533 = smul.u32 2, %s26
          %s534 = smul.u32 2, %s532
          %s536 = ssub.s32 512, 512
          %537 = vsyncadd %s525, %s536
          %s538 = smul.addr %s533, 2
          %s539 = sadd.s32 %s534, %s538
          %s540 = smul.addr %s539, 128
          %s541 = scalar_lea.hbm %s3, %s540
          %s542 = sshll.u32 %s528, 4
          %s543 = int_to_ptr.vmem [resolvable:$true] %s542
          %548 = dma.vmem_to_hbm [thread:$0]  %s543, 512, %s541, %s525, 256, 256, 16
        $region60: #{tpu_custom_call.1} parent=31 // pred_fallthru
          _
      $region32: #{tpu_custom_call.1} parent=5 // pred_fallthru
        _
      %p549 = scmp.le.s32.totalorder 2, %s16
      // Predicated region
      $region61: #{tpu_custom_call.1} parent=5 // pred_check
        %p550 = pneg %p549
      $region62: #{tpu_custom_call.1} parent=5 // pred_check_branch
        %552 = sbr.rel (%p550) target = $region64
      $region63: #{tpu_custom_call.1} parent=5 // pred_region
        %s553 = ssub.s32 %s16, 2
        // Predicated region
        $region65: #{tpu_custom_call.1} parent=63 // pred_check
          %p554 = pneg %p154
        $region66: #{tpu_custom_call.1} parent=63 // pred_check_branch
          %556 = sbr.rel (%p554) target = $region68
        $region67: #{tpu_custom_call.1} parent=63 // pred_region
          %s557 = sand.u32 %s139, 1
          %s558 = scalar_lea.sflag [#allocation8], %s557
          %s559 = sand.u32 %s139, 1
          %s560 = smul.addr %s559, 32
          %s561 = scalar_lea.vmem [#allocation11], %s560
          %562 = dma.done %s558, 512
        $region68: #{tpu_custom_call.1} parent=63 // pred_fallthru
          _
      $region64: #{tpu_custom_call.1} parent=5 // pred_fallthru
        _
    $region6: #{tpu_custom_call.1} parent=1 // loop_footer
      %s20 = sadd.s32 1, %s16
    $region7: #{tpu_custom_call.1} parent=1 // loop_footer_branch
      %15 = sbr.rel target = $region3
    $region8: #{tpu_custom_call.1} parent=1 // loop_exit
      _
    %563 = vsyncpa [#allocation7], 1
    %s564 = scalar_lea.sflag [#allocation7], 1
    %565 = vsyncpa %s564, 1
    %566 = vsyncpa [#allocation10], 1
    %s567 = scalar_lea.sflag [#allocation10], 1
    %568 = vsyncpa %s567, 1
    %569 = vsyncpa [#allocation8], 1
    %s570 = scalar_lea.sflag [#allocation8], 1
    %571 = vsyncpa %s570, 1

</llo_original>
